<compile_context>
chip_gen: v5e
topology: v5e:2x2
jax: 0.10.0
libtpu: 0.0.40
codegen_flags: <defaults>
</compile_context>

<pallas_src>
import numpy as np
import jax
import jax.numpy as jnp
from jax import lax
from jax.experimental import pallas as pl
from jax.experimental.pallas import tpu as pltpu

# ----------------------------- config (mirrors __init__) -----------------------------
ALPHA = 0.5                 # conf['alpha']
H = 32                      # bert_emb_size (hidden)
F = 16                      # feature_emb_size
W = 8                       # max_span_width
FFNN = 32                   # ffnn_size, ffnn_depth = 1
N_WORDS = 64                # num_words after input_mask
SENT_LEN = 16               # synthetic sentence length for sentence_map
MAX_NUM_EXTRACTED_SPANS = 20
TOP_SPAN_RATIO = 0.4
TC = 256                    # candidates per grid step (lane axis)
K_PAD = 128                 # span-emb feature dim (3H+F=112) padded to a full MXU contraction


# --------------------------------- Pallas kernel --------------------------------------
def mention_score_kernel(starts_ref, ends_ref, ta_ref, hyb_ref, doct_ref,
                         embw_ref, prior_ref, w1t_ref, b1_ref, w2_ref, out_ref):
    starts = starts_ref[...]      # (1, TC) int32, candidates on lanes
    ends = ends_ref[...]          # (1, TC) int32
    ta = ta_ref[...]              # (N, 1) f32   token-attention logits (hoisted)
    hyb_t = hyb_ref[...]          # (H, N) f32   hybrid doc, transposed
    doc_t = doct_ref[...]         # (H, N) f32   mention_doc, transposed

    n = ta.shape[0]
    tc = starts.shape[1]

    tok = lax.broadcasted_iota(jnp.int32, (n, tc), 0)          # token index on sublanes
    in_span = (tok >= starts) & (tok <= ends)                  # (N, TC)
    start_oh = (tok == starts).astype(jnp.float32)             # (N, TC)
    end_oh = (tok == ends).astype(jnp.float32)                 # (N, TC)

    # masked softmax over tokens with a per-candidate row max (matches torch reference)
    neg = jnp.float32(-1e30)
    s = jnp.where(in_span, ta, neg)                            # (N, TC)
    s_max = jnp.max(s, axis=0, keepdims=True)                  # (1, TC)
    pexp = jnp.exp(s - s_max)                                  # (N, TC); masked tokens -> 0
    den = jnp.sum(pexp, axis=0, keepdims=True)                 # (1, TC)
    inv_den = pl.reciprocal(den, approx=True)                  # EUP, ~free

    # attention-pooled head embedding
    head_t = jnp.dot(hyb_t, pexp,
                     preferred_element_type=jnp.float32) * inv_den        # (H, TC)

    # start / end token embedding gathers, fused into one MXU launch
    se_oh = jnp.concatenate([start_oh, end_oh], axis=1)                   # (N, 2*TC)
    se_t = jnp.dot(doc_t, se_oh, preferred_element_type=jnp.float32)      # (H, 2*TC)
    start_t = se_t[:, :tc]
    end_t = se_t[:, tc:]

    # span-width embedding + width-prior score (prior FFNN precomputed on host, b2 folded in)
    widths = ends - starts                                                # (1, TC)
    w_iota = lax.broadcasted_iota(jnp.int32, (W, tc), 0)
    width_oh = (w_iota == widths).astype(jnp.float32)                     # (W, TC)
    width_t = jnp.dot(embw_ref[...], width_oh,
                      preferred_element_type=jnp.float32)                 # (F, TC)
    width_score = jnp.sum(width_oh * prior_ref[...], axis=0, keepdims=True)  # (1, TC)

    # span_emb_score_ffnn as a single K=128 contraction
    pad_rows = K_PAD - (3 * H + F)
    pieces = [start_t, end_t, width_t, head_t]
    if pad_rows > 0:
        pieces.append(jnp.zeros((pad_rows, tc), jnp.float32))
    span_t = jnp.concatenate(pieces, axis=0)                              # (K_PAD, TC)
    h1 = jnp.dot(w1t_ref[...], span_t,
                 preferred_element_type=jnp.float32) + b1_ref[...]        # (FFNN, TC)
    h1 = jnp.maximum(h1, 0.0)
    score = jnp.sum(h1 * w2_ref[...], axis=0, keepdims=True)              # (1, TC)

    out_ref[...] = score + width_score                                    # lane-dense store


def mention_scores_pallas(starts_row, ends_row, doc, doc1, p):
    """starts_row/ends_row: (1, c_pad) int32; doc/doc1: (N, H) f32 -> (c_pad,) f32 scores."""
    c_pad = starts_row.shape[1]
    assert c_pad % TC == 0
    n, h = doc.shape
    nb = c_pad // TC

    # ---- candidate-invariant precompute, hoisted out of the grid (tiny XLA ops) ----
    hybrid = doc * (1.0 - ALPHA) + doc1 * ALPHA
    ta = jnp.dot(hybrid, p['w_attn']) + p['b_attn']                    # (N, 1)
    wp_h = jnp.maximum(jnp.dot(p['emb_wp'], p['wp1']) + p['bp1'], 0.0)
    width_prior = jnp.dot(wp_h, p['wp2']) + p['bp2']                   # (W, 1)
    prior_col = width_prior + p['b2'][0, 0]                            # fold span-FFNN output bias
    hyb_t = hybrid.T                                                   # (H, N)
    doc_t = doc.T                                                      # (H, N)
    embw_t = p['emb_width'].T                                          # (F, W)
    w1t = jnp.zeros((FFNN, K_PAD), jnp.float32).at[:, :3 * h + F].set(p['w1'].T)
    b1c = p['b1'].reshape(FFNN, 1)
    w2c = p['w2']                                                      # (FFNN, 1)

    def full(shape):
        return pl.BlockSpec(shape, lambda i: (0,) * len(shape))

    in_specs = [
        pl.BlockSpec((1, TC), lambda i: (0, i)),   # candidate starts (lane axis)
        pl.BlockSpec((1, TC), lambda i: (0, i)),   # candidate ends
        full((n, 1)),                              # token-attention logits
        full((h, n)),                              # hybrid^T
        full((h, n)),                              # mention_doc^T
        full((F, W)),                              # emb_span_width^T
        full((W, 1)),                              # width prior (+ b2)
        full((FFNN, K_PAD)),                       # span_emb_score_ffnn W1^T (zero-padded)
        full((FFNN, 1)),                           # b1
        full((FFNN, 1)),                           # W2
    ]

    out = pl.pallas_call(
        mention_score_kernel,
        out_shape=jax.ShapeDtypeStruct((1, c_pad), jnp.float32),
        grid_spec=pltpu.PrefetchScalarGridSpec(
            num_scalar_prefetch=0,
            grid=(nb,),
            in_specs=in_specs,
            out_specs=pl.BlockSpec((1, TC), lambda i: (0, i)),
        ),
        compiler_params=pltpu.CompilerParams(dimension_semantics=("parallel",)),
    )(starts_row, ends_row, ta, hyb_t, doc_t, embw_t, prior_col, w1t, b1c, w2c)
    return out.reshape(-1)


# ------------------------------- host-side glue ---------------------------------------
def extract_top_spans(candidate_idx_sorted, candidate_starts, candidate_ends, num_top_spans):
    """Greedy non-cross-overlapping selection (same as the PyTorch module, on CPU)."""
    selected = []
    start_to_max_end, end_to_min_start = {}, {}
    for idx in candidate_idx_sorted:
        if len(selected) >= num_top_spans:
            break
        s, e = candidate_starts[idx], candidate_ends[idx]
        cross = False
        for t in range(s, e + 1):
            if t > s and start_to_max_end.get(t, -1) > e:
                cross = True
                break
            ms = end_to_min_start.get(t, -1)
            if t < e and 0 <= ms < s:
                cross = True
                break
        if not cross:
            selected.append(idx)
            if e > start_to_max_end.get(s, -1):
                start_to_max_end[s] = e
            ms = end_to_min_start.get(e, -1)
            if ms == -1 or s < ms:
                end_to_min_start[e] = s
    selected = sorted(selected, key=lambda i: (candidate_starts[i], candidate_ends[i]))
    if len(selected) < num_top_spans:
        selected += [selected[0]] * (num_top_spans - len(selected))
    return selected


def ref_scores_np(starts, ends, doc, doc1, p):
    """Pure-numpy reference mirroring the PyTorch math (for a correctness check)."""
    g = lambda k: np.asarray(p[k], np.float32)
    hybrid = doc * (1 - ALPHA) + doc1 * ALPHA
    token_attn = hybrid @ g('w_attn')[:, 0] + g('b_attn')[0, 0]
    c, n = starts.shape[0], doc.shape[0]
    tokens = np.tile(np.arange(n)[None, :], (c, 1))
    mask = (tokens >= starts[:, None]) & (tokens <= ends[:, None])
    raw = np.where(mask, token_attn[None, :], -np.inf)
    raw = raw - raw.max(1, keepdims=True)
    e = np.exp(raw)
    attn = e / e.sum(1, keepdims=True)
    head = attn @ hybrid
    widths = ends - starts
    span = np.concatenate([doc[starts], doc[ends], g('emb_width')[widths], head], axis=1)
    h1 = np.maximum(span @ g('w1') + g('b1'), 0.0)
    score = (h1 @ g('w2') + g('b2'))[:, 0]
    wp_h = np.maximum(g('emb_wp') @ g('wp1') + g('bp1'), 0.0)
    wprior = (wp_h @ g('wp2') + g('bp2'))[:, 0]
    return score + wprior[widths]


def init_params(key):
    std = 0.02
    ks = jax.random.split(key, 8)
    return {
        'w_attn': (jax.random.normal(ks[0], (H, 1), jnp.float32) * std),
        'b_attn': jnp.zeros((1, 1), jnp.float32),
        'emb_width': (jax.random.normal(ks[1], (W, F), jnp.float32) * std),
        'w1': (jax.random.normal(ks[2], (3 * H + F, FFNN), jnp.float32) * std),
        'b1': jnp.zeros((1, FFNN), jnp.float32),
        'w2': (jax.random.normal(ks[3], (FFNN, 1), jnp.float32) * std),
        'b2': jnp.zeros((1, 1), jnp.float32),
        'emb_wp': (jax.random.normal(ks[4], (W, F), jnp.float32) * std),
        'wp1': (jax.random.normal(ks[5], (F, FFNN), jnp.float32) * std),
        'bp1': jnp.zeros((1, FFNN), jnp.float32),
        'wp2': (jax.random.normal(ks[6], (FFNN, 1), jnp.float32) * std),
        'bp2': jnp.zeros((1, 1), jnp.float32),
    }


if __name__ == "__main__":
    key = jax.random.PRNGKey(0)
    kp, kd, kd1 = jax.random.split(key, 3)
    params = init_params(kp)

    # synthetic encoder outputs (mention_doc, hidden_layers[1]) after input_mask selection
    mention_doc = jax.random.normal(kd, (N_WORDS, H), jnp.float32)
    mention_doc_one = jax.random.normal(kd1, (N_WORDS, H), jnp.float32)
    sentence_map = np.arange(N_WORDS) // SENT_LEN

    # candidate span enumeration + sentence-consistency mask (glue, as in the module)
    cs = np.tile(np.arange(N_WORDS)[:, None], (1, W))
    ce = cs + np.arange(W)[None, :]
    start_sent = sentence_map[cs]
    end_sent = sentence_map[np.minimum(ce, N_WORDS - 1)]
    valid = (ce < N_WORDS) & (start_sent == end_sent)
    cand_starts = cs[valid].astype(np.int32)
    cand_ends = ce[valid].astype(np.int32)
    num_cand = cand_starts.shape[0]

    c_pad = ((num_cand + TC - 1) // TC) * TC
    pad = c_pad - num_cand
    starts_row = np.concatenate([cand_starts, np.zeros(pad, np.int32)])[None, :]
    ends_row = np.concatenate([cand_ends, np.zeros(pad, np.int32)])[None, :]

    scores_pad = mention_scores_pallas(
        jnp.asarray(starts_row), jnp.asarray(ends_row),
        mention_doc, mention_doc_one, params)
    scores_pad = jax.block_until_ready(scores_pad)
    candidate_mention_scores = np.asarray(scores_pad)[:num_cand]

    # correctness check against a pure-numpy reference of the same math
    ref = ref_scores_np(cand_starts, cand_ends,
                        np.asarray(mention_doc), np.asarray(mention_doc_one), params)
    np.testing.assert_allclose(candidate_mention_scores, ref, rtol=5e-2, atol=5e-3)

    # top-span selection (inference path: no gold labels -> return scores/starts/ends)
    num_top_spans = int(min(MAX_NUM_EXTRACTED_SPANS, TOP_SPAN_RATIO * N_WORDS))
    order = np.argsort(-candidate_mention_scores, kind='stable').tolist()
    sel = np.asarray(extract_top_spans(order, cand_starts.tolist(), cand_ends.tolist(),
                                       num_top_spans), dtype=np.int64)
    top_span_mention_scores = candidate_mention_scores[sel]
    top_span_starts = cand_starts[sel]
    top_span_ends = cand_ends[sel]
    assert top_span_mention_scores.shape == (num_top_spans,)
    assert top_span_starts.shape == (num_top_spans,)
    assert top_span_ends.shape == (num_top_spans,)

    print("KERNEL_OK")
</pallas_src>

<mosaic_0001>
module attributes {stable_mosaic.version = 11 : i64} {
  func.func @mention_score_kernel(%arg0: i32, %arg1: memref<1x256xi32, #tpu.memory_space<vmem>>, %arg2: memref<1x256xi32, #tpu.memory_space<vmem>>, %arg3: memref<64x1xf32, #tpu.memory_space<vmem>>, %arg4: memref<32x64xf32, #tpu.memory_space<vmem>>, %arg5: memref<32x64xf32, #tpu.memory_space<vmem>>, %arg6: memref<16x8xf32, #tpu.memory_space<vmem>>, %arg7: memref<8x1xf32, #tpu.memory_space<vmem>>, %arg8: memref<32x128xf32, #tpu.memory_space<vmem>>, %arg9: memref<32x1xf32, #tpu.memory_space<vmem>>, %arg10: memref<32x1xf32, #tpu.memory_space<vmem>>, %arg11: memref<1x256xf32, #tpu.memory_space<vmem>>) attributes {dimension_semantics = [#tpu.dimension_semantics<parallel>], iteration_bounds = array<i64: 2>, scalar_prefetch = 0 : i64, scratch_operands = 0 : i64, tpu.core_type = #tpu.core_type<tc>, window_params = [{transform_indices = @transform_0, window_bounds = array<i64: 1, 256>}, {transform_indices = @transform_1, window_bounds = array<i64: 1, 256>}, {pipeline_mode = #tpu.pipeline_mode<synchronous>, transform_indices = @transform_2, window_bounds = array<i64: 64, 1>}, {pipeline_mode = #tpu.pipeline_mode<synchronous>, transform_indices = @transform_3, window_bounds = array<i64: 32, 64>}, {pipeline_mode = #tpu.pipeline_mode<synchronous>, transform_indices = @transform_4, window_bounds = array<i64: 32, 64>}, {pipeline_mode = #tpu.pipeline_mode<synchronous>, transform_indices = @transform_5, window_bounds = array<i64: 16, 8>}, {pipeline_mode = #tpu.pipeline_mode<synchronous>, transform_indices = @transform_6, window_bounds = array<i64: 8, 1>}, {pipeline_mode = #tpu.pipeline_mode<synchronous>, transform_indices = @transform_7, window_bounds = array<i64: 32, 128>}, {pipeline_mode = #tpu.pipeline_mode<synchronous>, transform_indices = @transform_8, window_bounds = array<i64: 32, 1>}, {pipeline_mode = #tpu.pipeline_mode<synchronous>, transform_indices = @transform_9, window_bounds = array<i64: 32, 1>}, {transform_indices = @transform_10, window_bounds = array<i64: 1, 256>}]} {
    %c0 = arith.constant 0 : index
    %c0_0 = arith.constant 0 : index
    %0 = vector.load %arg1[%c0, %c0_0] : memref<1x256xi32, #tpu.memory_space<vmem>>, vector<1x256xi32>
    %c0_1 = arith.constant 0 : index
    %c0_2 = arith.constant 0 : index
    %1 = vector.load %arg2[%c0_1, %c0_2] : memref<1x256xi32, #tpu.memory_space<vmem>>, vector<1x256xi32>
    %c0_3 = arith.constant 0 : index
    %c0_4 = arith.constant 0 : index
    %2 = vector.load %arg3[%c0_3, %c0_4] : memref<64x1xf32, #tpu.memory_space<vmem>>, vector<64x1xf32>
    %c0_5 = arith.constant 0 : index
    %c0_6 = arith.constant 0 : index
    %3 = vector.load %arg4[%c0_5, %c0_6] : memref<32x64xf32, #tpu.memory_space<vmem>>, vector<32x64xf32>
    %c0_7 = arith.constant 0 : index
    %c0_8 = arith.constant 0 : index
    %4 = vector.load %arg5[%c0_7, %c0_8] : memref<32x64xf32, #tpu.memory_space<vmem>>, vector<32x64xf32>
    %5 = tpu.iota {dimensions = array<i32: 0>} : vector<64x256xi32>
    %6 = vector.broadcast %0 : vector<1x256xi32> to vector<64x256xi32>
    %7 = arith.cmpi sge, %5, %6 : vector<64x256xi32>
    %8 = vector.broadcast %1 : vector<1x256xi32> to vector<64x256xi32>
    %9 = arith.cmpi sle, %5, %8 : vector<64x256xi32>
    %10 = arith.andi %7, %9 : vector<64x256xi1>
    %11 = vector.broadcast %0 : vector<1x256xi32> to vector<64x256xi32>
    %12 = arith.cmpi eq, %5, %11 : vector<64x256xi32>
    %13 = arith.extui %12 : vector<64x256xi1> to vector<64x256xi32>
    %14 = arith.sitofp %13 : vector<64x256xi32> to vector<64x256xf32>
    %15 = vector.broadcast %1 : vector<1x256xi32> to vector<64x256xi32>
    %16 = arith.cmpi eq, %5, %15 : vector<64x256xi32>
    %17 = arith.extui %16 : vector<64x256xi1> to vector<64x256xi32>
    %18 = arith.sitofp %17 : vector<64x256xi32> to vector<64x256xf32>
    %cst = arith.constant -1.000000e+30 : f32
    %19 = vector.shape_cast %2 : vector<64x1xf32> to vector<64x1xf32>
    %20 = vector.broadcast %19 : vector<64x1xf32> to vector<64x256xf32>
    %21 = vector.broadcast %cst : f32 to vector<64x256xf32>
    %22 = arith.select %10, %20, %21 : vector<64x256xi1>, vector<64x256xf32>
    %cst_9 = arith.constant dense<0xFF800000> : vector<256xf32>
    %23 = vector.multi_reduction <maximumf>, %22, %cst_9 [0] : vector<64x256xf32> to vector<256xf32>
    %24 = vector.shape_cast %23 : vector<256xf32> to vector<1x256xf32>
    %25 = vector.broadcast %24 : vector<1x256xf32> to vector<64x256xf32>
    %26 = arith.subf %22, %25 : vector<64x256xf32>
    %27 = math.exp %26 : vector<64x256xf32>
    %cst_10 = arith.constant dense<0.000000e+00> : vector<256xf32>
    %28 = vector.multi_reduction <add>, %27, %cst_10 [0] : vector<64x256xf32> to vector<256xf32>
    %29 = vector.shape_cast %28 : vector<256xf32> to vector<1x256xf32>
    %30 = tpu.reciprocal %29 {approx = true} : vector<1x256xf32> -> vector<1x256xf32>
    %cst_11 = arith.constant dense<0.000000e+00> : vector<32x256xf32>
    %31 = tpu.matmul %3, %27, %cst_11 {dimension_numbers = #tpu.dot_dimension_numbers<[1], [0], [0], [1], [0, 0, 1, 1], [], []>} : vector<32x64xf32>, vector<64x256xf32>, vector<32x256xf32> -> vector<32x256xf32>
    %32 = vector.broadcast %30 : vector<1x256xf32> to vector<32x256xf32>
    %33 = arith.mulf %31, %32 : vector<32x256xf32>
    %34 = tpu.concatenate %14, %18 in 1 : vector<64x256xf32>, vector<64x256xf32> -> vector<64x512xf32>
    %cst_12 = arith.constant dense<0.000000e+00> : vector<32x512xf32>
    %35 = tpu.matmul %4, %34, %cst_12 {dimension_numbers = #tpu.dot_dimension_numbers<[1], [0], [0], [1], [0, 0, 1, 1], [], []>} : vector<32x64xf32>, vector<64x512xf32>, vector<32x512xf32> -> vector<32x512xf32>
    %36 = vector.extract_strided_slice %35 {offsets = [0, 0], sizes = [32, 256], strides = [1, 1]} : vector<32x512xf32> to vector<32x256xf32>
    %37 = vector.extract_strided_slice %35 {offsets = [0, 256], sizes = [32, 256], strides = [1, 1]} : vector<32x512xf32> to vector<32x256xf32>
    %38 = arith.subi %1, %0 : vector<1x256xi32>
    %39 = tpu.iota {dimensions = array<i32: 0>} : vector<8x256xi32>
    %40 = vector.broadcast %38 : vector<1x256xi32> to vector<8x256xi32>
    %41 = arith.cmpi eq, %39, %40 : vector<8x256xi32>
    %42 = arith.extui %41 : vector<8x256xi1> to vector<8x256xi32>
    %43 = arith.sitofp %42 : vector<8x256xi32> to vector<8x256xf32>
    %c0_13 = arith.constant 0 : index
    %c0_14 = arith.constant 0 : index
    %44 = vector.load %arg6[%c0_13, %c0_14] : memref<16x8xf32, #tpu.memory_space<vmem>>, vector<16x8xf32>
    %cst_15 = arith.constant dense<0.000000e+00> : vector<16x256xf32>
    %45 = tpu.matmul %44, %43, %cst_15 {dimension_numbers = #tpu.dot_dimension_numbers<[1], [0], [0], [1], [0, 0, 1, 1], [], []>} : vector<16x8xf32>, vector<8x256xf32>, vector<16x256xf32> -> vector<16x256xf32>
    %c0_16 = arith.constant 0 : index
    %c0_17 = arith.constant 0 : index
    %46 = vector.load %arg7[%c0_16, %c0_17] : memref<8x1xf32, #tpu.memory_space<vmem>>, vector<8x1xf32>
    %47 = vector.broadcast %46 : vector<8x1xf32> to vector<8x256xf32>
    %48 = arith.mulf %43, %47 : vector<8x256xf32>
    %cst_18 = arith.constant dense<0.000000e+00> : vector<256xf32>
    %49 = vector.multi_reduction <add>, %48, %cst_18 [0] : vector<8x256xf32> to vector<256xf32>
    %50 = vector.shape_cast %49 : vector<256xf32> to vector<1x256xf32>
    %cst_19 = arith.constant 0.000000e+00 : f32
    %51 = vector.broadcast %cst_19 : f32 to vector<16x256xf32>
    %52 = tpu.concatenate %36, %37, %45, %33, %51 in 0 : vector<32x256xf32>, vector<32x256xf32>, vector<16x256xf32>, vector<32x256xf32>, vector<16x256xf32> -> vector<128x256xf32>
    %c0_20 = arith.constant 0 : index
    %c0_21 = arith.constant 0 : index
    %53 = vector.load %arg8[%c0_20, %c0_21] : memref<32x128xf32, #tpu.memory_space<vmem>>, vector<32x128xf32>
    %cst_22 = arith.constant dense<0.000000e+00> : vector<32x256xf32>
    %54 = tpu.matmul %53, %52, %cst_22 {dimension_numbers = #tpu.dot_dimension_numbers<[1], [0], [0], [1], [0, 0, 1, 1], [], []>} : vector<32x128xf32>, vector<128x256xf32>, vector<32x256xf32> -> vector<32x256xf32>
    %c0_23 = arith.constant 0 : index
    %c0_24 = arith.constant 0 : index
    %55 = vector.load %arg9[%c0_23, %c0_24] : memref<32x1xf32, #tpu.memory_space<vmem>>, vector<32x1xf32>
    %56 = vector.broadcast %55 : vector<32x1xf32> to vector<32x256xf32>
    %57 = arith.addf %54, %56 : vector<32x256xf32>
    %cst_25 = arith.constant 0.000000e+00 : f32
    %58 = vector.broadcast %cst_25 : f32 to vector<32x256xf32>
    %59 = arith.maximumf %57, %58 : vector<32x256xf32>
    %c0_26 = arith.constant 0 : index
    %c0_27 = arith.constant 0 : index
    %60 = vector.load %arg10[%c0_26, %c0_27] : memref<32x1xf32, #tpu.memory_space<vmem>>, vector<32x1xf32>
    %61 = vector.broadcast %60 : vector<32x1xf32> to vector<32x256xf32>
    %62 = arith.mulf %59, %61 : vector<32x256xf32>
    %cst_28 = arith.constant dense<0.000000e+00> : vector<256xf32>
    %63 = vector.multi_reduction <add>, %62, %cst_28 [0] : vector<32x256xf32> to vector<256xf32>
    %64 = vector.shape_cast %63 : vector<256xf32> to vector<1x256xf32>
    %65 = arith.addf %64, %50 : vector<1x256xf32>
    %c0_29 = arith.constant 0 : index
    %c0_30 = arith.constant 0 : index
    %66 = vector.load %arg11[%c0_29, %c0_30] : memref<1x256xf32, #tpu.memory_space<vmem>>, vector<1x256xf32>
    tpu.vector_store %arg11[%c0_29, %c0_30], %65 {strides = array<i32>} : memref<1x256xf32, #tpu.memory_space<vmem>>, vector<1x256xf32>,
    return
  }
  func.func @transform_0(%arg0: i32) -> (i32, i32) {
    %c0_i32 = arith.constant 0 : i32
    %c0_i32_0 = arith.constant 0 : i32
    return %c0_i32, %arg0 : i32, i32
  }
  func.func @transform_1(%arg0: i32) -> (i32, i32) {
    %c0_i32 = arith.constant 0 : i32
    %c0_i32_0 = arith.constant 0 : i32
    return %c0_i32, %arg0 : i32, i32
  }
  func.func @transform_2(%arg0: i32) -> (i32, i32) {
    %c0_i32 = arith.constant 0 : i32
    %c0_i32_0 = arith.constant 0 : i32
    %c0_i32_1 = arith.constant 0 : i32
    return %c0_i32, %c0_i32_0 : i32, i32
  }
  func.func @transform_3(%arg0: i32) -> (i32, i32) {
    %c0_i32 = arith.constant 0 : i32
    %c0_i32_0 = arith.constant 0 : i32
    %c0_i32_1 = arith.constant 0 : i32
    return %c0_i32, %c0_i32_0 : i32, i32
  }
  func.func @transform_4(%arg0: i32) -> (i32, i32) {
    %c0_i32 = arith.constant 0 : i32
    %c0_i32_0 = arith.constant 0 : i32
    %c0_i32_1 = arith.constant 0 : i32
    return %c0_i32, %c0_i32_0 : i32, i32
  }
  func.func @transform_5(%arg0: i32) -> (i32, i32) {
    %c0_i32 = arith.constant 0 : i32
    %c0_i32_0 = arith.constant 0 : i32
    %c0_i32_1 = arith.constant 0 : i32
    return %c0_i32, %c0_i32_0 : i32, i32
  }
  func.func @transform_6(%arg0: i32) -> (i32, i32) {
    %c0_i32 = arith.constant 0 : i32
    %c0_i32_0 = arith.constant 0 : i32
    %c0_i32_1 = arith.constant 0 : i32
    return %c0_i32, %c0_i32_0 : i32, i32
  }
  func.func @transform_7(%arg0: i32) -> (i32, i32) {
    %c0_i32 = arith.constant 0 : i32
    %c0_i32_0 = arith.constant 0 : i32
    %c0_i32_1 = arith.constant 0 : i32
    return %c0_i32, %c0_i32_0 : i32, i32
  }
  func.func @transform_8(%arg0: i32) -> (i32, i32) {
    %c0_i32 = arith.constant 0 : i32
    %c0_i32_0 = arith.constant 0 : i32
    %c0_i32_1 = arith.constant 0 : i32
    return %c0_i32, %c0_i32_0 : i32, i32
  }
  func.func @transform_9(%arg0: i32) -> (i32, i32) {
    %c0_i32 = arith.constant 0 : i32
    %c0_i32_0 = arith.constant 0 : i32
    %c0_i32_1 = arith.constant 0 : i32
    return %c0_i32, %c0_i32_0 : i32, i32
  }
  func.func @transform_10(%arg0: i32) -> (i32, i32) {
    %c0_i32 = arith.constant 0 : i32
    %c0_i32_0 = arith.constant 0 : i32
    return %c0_i32, %arg0 : i32, i32
  }
}

</mosaic_0001>

<llo_original>
// kernel: tpu_custom_call.1
$region0: #{tpu_custom_call.1}
  #allocation0 [shape = 'u32[]', space=smem, size = 0x4, offset = 0x4, fixed_abs, tag = 'smem constant byte address 0x4 - core index']
  #allocation1 [shape = 'u32[72,128]{1,0:T(1,128)}', space=vmem, size = 0x9000, scoped, tag = 'internal scratch']
  %s0 = inlined_call_operand.vmem [shape: s32[1,512], index: 0, kind: input, shape index: {}]
  %s1 = inlined_call_operand.vmem [shape: s32[1,512], index: 1, kind: input, shape index: {}]
  %s2 = inlined_call_operand.vmem [shape: f32[64,1], index: 2, kind: input, shape index: {}]
  %s3 = inlined_call_operand.vmem [shape: f32[32,64], index: 3, kind: input, shape index: {}]
  %s4 = inlined_call_operand.vmem [shape: f32[32,64], index: 4, kind: input, shape index: {}]
  %s5 = inlined_call_operand.vmem [shape: f32[16,8], index: 5, kind: input, shape index: {}]
  %s6 = inlined_call_operand.vmem [shape: f32[8,1], index: 6, kind: input, shape index: {}]
  %s7 = inlined_call_operand.vmem [shape: f32[32,128], index: 7, kind: input, shape index: {}]
  %s8 = inlined_call_operand.vmem [shape: f32[32,1], index: 8, kind: input, shape index: {}]
  %s9 = inlined_call_operand.vmem [shape: f32[32,1], index: 9, kind: input, shape index: {}]
  %s10 = inlined_call_operand.hbm [shape: f32[1,512], index: 10, kind: output, shape index: {}]
  %s11 = sld [smem:[#allocation0]]
  $region73: #{tpu_custom_call.1} parent=0
    _
  %s13 = ssub.s32 1, %s11
  %s14 = scalar_select 0, %s13, %s11
  $region1: #{tpu_custom_call.1} parent=0
    #allocation2 [shape = 'u8[2048]{0}', space=vmem, size = 0x800, scoped, tag = 'output window, operand 0']
    #allocation3 [shape = 's32[2]{0}', space=sflag, size = 0x8, scoped, tag = 'scoped memory for tpu_custom_call.1']
    %15 = vsyncpa [#allocation3], 0
    %s16 = scalar_lea.sflag [#allocation3], 1
    %17 = vsyncpa %s16, 0
    loop: start=0, step=1, limit=4
    $region2: #{tpu_custom_call.1} parent=1 // loop_pre_header
      _
    $region3: #{tpu_custom_call.1} parent=1 // loop_header
      %s19 = sphi 0, %s23
      %p20 = scmp.ge.s32.totalorder %s19, 4
      %s29 = sphi 0, %s31
      %s32 = sphi 0, %s29
      %s33 = sphi 0, %s32
      %s49 = sphi 0, %s33
      %s55 = sphi 0, %s57
      %s58 = sphi 0, %s55
      %s59 = sphi 0, %s58
      %s75 = sphi 0, %s59
      %s79 = sphi 0, %s79
      %s81 = sphi 0, %s79
      %s82 = sphi 0, %s81
      %s96 = sphi 0, %s82
      %s100 = sphi 0, %s100
      %s102 = sphi 0, %s100
      %s103 = sphi 0, %s102
      %s117 = sphi 0, %s103
      %s121 = sphi 0, %s121
      %s123 = sphi 0, %s121
      %s124 = sphi 0, %s123
      %s138 = sphi 0, %s124
      %s142 = sphi 0, %s142
      %s144 = sphi 0, %s142
      %s145 = sphi 0, %s144
      %s159 = sphi 0, %s145
      %s163 = sphi 0, %s163
      %s165 = sphi 0, %s163
      %s166 = sphi 0, %s165
      %s180 = sphi 0, %s166
      %s184 = sphi 0, %s184
      %s186 = sphi 0, %s184
      %s187 = sphi 0, %s186
      %s201 = sphi 0, %s187
      %s205 = sphi 0, %s205
      %s207 = sphi 0, %s205
      %s208 = sphi 0, %s207
      %s222 = sphi 0, %s208
      %s226 = sphi 0, %s226
      %s228 = sphi 0, %s226
      %s229 = sphi 0, %s228
      %s243 = sphi 0, %s229
      %s249 = sphi 0, %s251
      %s252 = sphi 0, %s249
      %s253 = sphi 0, %s252
      %s269 = sphi 0, %s253
    $region4: #{tpu_custom_call.1} parent=1 // loop_header_branch
      %22 = sbr.rel (%p20) target = $region8
    $region5: #{tpu_custom_call.1} parent=1 // loop_body
      %s24 = ssub.s32 %s19, 1
      %s25 = ssub.s32 %s19, 2
      %s26 = sadd.s32 %s19, 1
      %s27 = ssub.s32 %s19, %s26
      %p28 = scmp.eq.s32.totalorder %s27, 0
      %s30 = sadd.s32 %s29, 1
      %s31 = scalar_select %p28, %s29, %s30
      %p34 = pneg %p28
      %p35 = scmp.eq.s32.totalorder %s19, 1
      %p36 = por %p34, %p35
      %p37 = scmp.ne.s32.totalorder %s29, %s32
      %p38 = scmp.eq.s32.totalorder %s19, 0
      %p39 = por %p37, %p38
      %p40 = scmp.ne.s32.totalorder %s29, %s32
      %p41 = scmp.eq.s32.totalorder %s24, 1
      %p42 = por %p40, %p41
      %p43 = scmp.ne.s32.totalorder %s32, %s33
      %p44 = scmp.eq.s32.totalorder %s24, 0
      %p45 = por %p43, %p44
      %p46 = scmp.ne.s32.totalorder %s32, %s33
      %p47 = scmp.eq.s32.totalorder %s25, 1
      %p48 = por %p46, %p47
      %p50 = scmp.ne.s32.totalorder %s33, %s49
      %p51 = scmp.eq.s32.totalorder %s25, 0
      %p52 = por %p50, %p51
      %s53 = ssub.s32 %s19, %s26
      %p54 = scmp.eq.s32.totalorder %s53, 0
      %s56 = sadd.s32 %s55, 1
      %s57 = scalar_select %p54, %s55, %s56
      %p60 = pneg %p54
      %p61 = scmp.eq.s32.totalorder %s19, 1
      %p62 = por %p60, %p61
      %p63 = scmp.ne.s32.totalorder %s55, %s58
      %p64 = scmp.eq.s32.totalorder %s19, 0
      %p65 = por %p63, %p64
      %p66 = scmp.ne.s32.totalorder %s55, %s58
      %p67 = scmp.eq.s32.totalorder %s24, 1
      %p68 = por %p66, %p67
      %p69 = scmp.ne.s32.totalorder %s58, %s59
      %p70 = scmp.eq.s32.totalorder %s24, 0
      %p71 = por %p69, %p70
      %p72 = scmp.ne.s32.totalorder %s58, %s59
      %p73 = scmp.eq.s32.totalorder %s25, 1
      %p74 = por %p72, %p73
      %p76 = scmp.ne.s32.totalorder %s59, %s75
      %p77 = scmp.eq.s32.totalorder %s25, 0
      %p78 = por %p76, %p77
      %s80 = sadd.s32 %s79, 1
      %p83 = scmp.eq.s32.totalorder %s19, 1
      %p84 = scmp.ne.s32.totalorder %s79, %s81
      %p85 = scmp.eq.s32.totalorder %s19, 0
      %p86 = por %p84, %p85
      %p87 = scmp.ne.s32.totalorder %s79, %s81
      %p88 = scmp.eq.s32.totalorder %s24, 1
      %p89 = por %p87, %p88
      %p90 = scmp.ne.s32.totalorder %s81, %s82
      %p91 = scmp.eq.s32.totalorder %s24, 0
      %p92 = por %p90, %p91
      %p93 = scmp.ne.s32.totalorder %s81, %s82
      %p94 = scmp.eq.s32.totalorder %s25, 1
      %p95 = por %p93, %p94
      %p97 = scmp.ne.s32.totalorder %s82, %s96
      %p98 = scmp.eq.s32.totalorder %s25, 0
      %p99 = por %p97, %p98
      %s101 = sadd.s32 %s100, 1
      %p104 = scmp.eq.s32.totalorder %s19, 1
      %p105 = scmp.ne.s32.totalorder %s100, %s102
      %p106 = scmp.eq.s32.totalorder %s19, 0
      %p107 = por %p105, %p106
      %p108 = scmp.ne.s32.totalorder %s100, %s102
      %p109 = scmp.eq.s32.totalorder %s24, 1
      %p110 = por %p108, %p109
      %p111 = scmp.ne.s32.totalorder %s102, %s103
      %p112 = scmp.eq.s32.totalorder %s24, 0
      %p113 = por %p111, %p112
      %p114 = scmp.ne.s32.totalorder %s102, %s103
      %p115 = scmp.eq.s32.totalorder %s25, 1
      %p116 = por %p114, %p115
      %p118 = scmp.ne.s32.totalorder %s103, %s117
      %p119 = scmp.eq.s32.totalorder %s25, 0
      %p120 = por %p118, %p119
      %s122 = sadd.s32 %s121, 1
      %p125 = scmp.eq.s32.totalorder %s19, 1
      %p126 = scmp.ne.s32.totalorder %s121, %s123
      %p127 = scmp.eq.s32.totalorder %s19, 0
      %p128 = por %p126, %p127
      %p129 = scmp.ne.s32.totalorder %s121, %s123
      %p130 = scmp.eq.s32.totalorder %s24, 1
      %p131 = por %p129, %p130
      %p132 = scmp.ne.s32.totalorder %s123, %s124
      %p133 = scmp.eq.s32.totalorder %s24, 0
      %p134 = por %p132, %p133
      %p135 = scmp.ne.s32.totalorder %s123, %s124
      %p136 = scmp.eq.s32.totalorder %s25, 1
      %p137 = por %p135, %p136
      %p139 = scmp.ne.s32.totalorder %s124, %s138
      %p140 = scmp.eq.s32.totalorder %s25, 0
      %p141 = por %p139, %p140
      %s143 = sadd.s32 %s142, 1
      %p146 = scmp.eq.s32.totalorder %s19, 1
      %p147 = scmp.ne.s32.totalorder %s142, %s144
      %p148 = scmp.eq.s32.totalorder %s19, 0
      %p149 = por %p147, %p148
      %p150 = scmp.ne.s32.totalorder %s142, %s144
      %p151 = scmp.eq.s32.totalorder %s24, 1
      %p152 = por %p150, %p151
      %p153 = scmp.ne.s32.totalorder %s144, %s145
      %p154 = scmp.eq.s32.totalorder %s24, 0
      %p155 = por %p153, %p154
      %p156 = scmp.ne.s32.totalorder %s144, %s145
      %p157 = scmp.eq.s32.totalorder %s25, 1
      %p158 = por %p156, %p157
      %p160 = scmp.ne.s32.totalorder %s145, %s159
      %p161 = scmp.eq.s32.totalorder %s25, 0
      %p162 = por %p160, %p161
      %s164 = sadd.s32 %s163, 1
      %p167 = scmp.eq.s32.totalorder %s19, 1
      %p168 = scmp.ne.s32.totalorder %s163, %s165
      %p169 = scmp.eq.s32.totalorder %s19, 0
      %p170 = por %p168, %p169
      %p171 = scmp.ne.s32.totalorder %s163, %s165
      %p172 = scmp.eq.s32.totalorder %s24, 1
      %p173 = por %p171, %p172
      %p174 = scmp.ne.s32.totalorder %s165, %s166
      %p175 = scmp.eq.s32.totalorder %s24, 0
      %p176 = por %p174, %p175
      %p177 = scmp.ne.s32.totalorder %s165, %s166
      %p178 = scmp.eq.s32.totalorder %s25, 1
      %p179 = por %p177, %p178
      %p181 = scmp.ne.s32.totalorder %s166, %s180
      %p182 = scmp.eq.s32.totalorder %s25, 0
      %p183 = por %p181, %p182
      %s185 = sadd.s32 %s184, 1
      %p188 = scmp.eq.s32.totalorder %s19, 1
      %p189 = scmp.ne.s32.totalorder %s184, %s186
      %p190 = scmp.eq.s32.totalorder %s19, 0
      %p191 = por %p189, %p190
      %p192 = scmp.ne.s32.totalorder %s184, %s186
      %p193 = scmp.eq.s32.totalorder %s24, 1
      %p194 = por %p192, %p193
      %p195 = scmp.ne.s32.totalorder %s186, %s187
      %p196 = scmp.eq.s32.totalorder %s24, 0
      %p197 = por %p195, %p196
      %p198 = scmp.ne.s32.totalorder %s186, %s187
      %p199 = scmp.eq.s32.totalorder %s25, 1
      %p200 = por %p198, %p199
      %p202 = scmp.ne.s32.totalorder %s187, %s201
      %p203 = scmp.eq.s32.totalorder %s25, 0
      %p204 = por %p202, %p203
      %s206 = sadd.s32 %s205, 1
      %p209 = scmp.eq.s32.totalorder %s19, 1
      %p210 = scmp.ne.s32.totalorder %s205, %s207
      %p211 = scmp.eq.s32.totalorder %s19, 0
      %p212 = por %p210, %p211
      %p213 = scmp.ne.s32.totalorder %s205, %s207
      %p214 = scmp.eq.s32.totalorder %s24, 1
      %p215 = por %p213, %p214
      %p216 = scmp.ne.s32.totalorder %s207, %s208
      %p217 = scmp.eq.s32.totalorder %s24, 0
      %p218 = por %p216, %p217
      %p219 = scmp.ne.s32.totalorder %s207, %s208
      %p220 = scmp.eq.s32.totalorder %s25, 1
      %p221 = por %p219, %p220
      %p223 = scmp.ne.s32.totalorder %s208, %s222
      %p224 = scmp.eq.s32.totalorder %s25, 0
      %p225 = por %p223, %p224
      %s227 = sadd.s32 %s226, 1
      %p230 = scmp.eq.s32.totalorder %s19, 1
      %p231 = scmp.ne.s32.totalorder %s226, %s228
      %p232 = scmp.eq.s32.totalorder %s19, 0
      %p233 = por %p231, %p232
      %p234 = scmp.ne.s32.totalorder %s226, %s228
      %p235 = scmp.eq.s32.totalorder %s24, 1
      %p236 = por %p234, %p235
      %p237 = scmp.ne.s32.totalorder %s228, %s229
      %p238 = scmp.eq.s32.totalorder %s24, 0
      %p239 = por %p237, %p238
      %p240 = scmp.ne.s32.totalorder %s228, %s229
      %p241 = scmp.eq.s32.totalorder %s25, 1
      %p242 = por %p240, %p241
      %p244 = scmp.ne.s32.totalorder %s229, %s243
      %p245 = scmp.eq.s32.totalorder %s25, 0
      %p246 = por %p244, %p245
      %s247 = ssub.s32 %s19, %s26
      %p248 = scmp.eq.s32.totalorder %s247, 0
      %s250 = sadd.s32 %s249, 1
      %s251 = scalar_select %p248, %s249, %s250
      %p254 = pneg %p248
      %p255 = scmp.eq.s32.totalorder %s19, 1
      %p256 = por %p254, %p255
      %p257 = scmp.ne.s32.totalorder %s249, %s252
      %p258 = scmp.eq.s32.totalorder %s19, 0
      %p259 = por %p257, %p258
      %p260 = scmp.ne.s32.totalorder %s249, %s252
      %p261 = scmp.eq.s32.totalorder %s24, 1
      %p262 = por %p260, %p261
      %p263 = scmp.ne.s32.totalorder %s252, %s253
      %p264 = scmp.eq.s32.totalorder %s24, 0
      %p265 = por %p263, %p264
      %p266 = scmp.ne.s32.totalorder %s252, %s253
      %p267 = scmp.eq.s32.totalorder %s25, 1
      %p268 = por %p266, %p267
      %p270 = scmp.ne.s32.totalorder %s253, %s269
      %p271 = scmp.eq.s32.totalorder %s25, 0
      %p272 = por %p270, %p271
      %p273 = scmp.le.s32.totalorder 1, %s19
      %p274 = scmp.lt.s32.totalorder %s19, 3
      %p275 = pnand %p273, %p274
      %p276 = pneg %p275
      // Predicated region
      $region9: #{tpu_custom_call.1} parent=5 // pred_check
        _
      $region10: #{tpu_custom_call.1} parent=5 // pred_check_branch
        %278 = sbr.rel (%p275) target = $region12
      $region11: #{tpu_custom_call.1} parent=5 // pred_region
        %s279 = ssub.s32 %s19, 1
        // Predicated region
        $region13: #{tpu_custom_call.1} parent=11 // pred_check
          %p280 = pneg %p92
        $region14: #{tpu_custom_call.1} parent=11 // pred_check_branch
          %282 = sbr.rel (%p280) target = $region16
        $region15: #{tpu_custom_call.1} parent=11 // pred_region
          _
        $region16: #{tpu_custom_call.1} parent=11 // pred_fallthru
          _
        // Predicated region
        $region17: #{tpu_custom_call.1} parent=11 // pred_check
          %p283 = pneg %p113
        $region18: #{tpu_custom_call.1} parent=11 // pred_check_branch
          %285 = sbr.rel (%p283) target = $region20
        $region19: #{tpu_custom_call.1} parent=11 // pred_region
          _
        $region20: #{tpu_custom_call.1} parent=11 // pred_fallthru
          _
        // Predicated region
        $region21: #{tpu_custom_call.1} parent=11 // pred_check
          %p286 = pneg %p134
        $region22: #{tpu_custom_call.1} parent=11 // pred_check_branch
          %288 = sbr.rel (%p286) target = $region24
        $region23: #{tpu_custom_call.1} parent=11 // pred_region
          _
        $region24: #{tpu_custom_call.1} parent=11 // pred_fallthru
          _
        // Predicated region
        $region25: #{tpu_custom_call.1} parent=11 // pred_check
          %p289 = pneg %p155
        $region26: #{tpu_custom_call.1} parent=11 // pred_check_branch
          %291 = sbr.rel (%p289) target = $region28
        $region27: #{tpu_custom_call.1} parent=11 // pred_region
          _
        $region28: #{tpu_custom_call.1} parent=11 // pred_fallthru
          _
        // Predicated region
        $region29: #{tpu_custom_call.1} parent=11 // pred_check
          %p292 = pneg %p176
        $region30: #{tpu_custom_call.1} parent=11 // pred_check_branch
          %294 = sbr.rel (%p292) target = $region32
        $region31: #{tpu_custom_call.1} parent=11 // pred_region
          _
        $region32: #{tpu_custom_call.1} parent=11 // pred_fallthru
          _
        // Predicated region
        $region33: #{tpu_custom_call.1} parent=11 // pred_check
          %p295 = pneg %p197
        $region34: #{tpu_custom_call.1} parent=11 // pred_check_branch
          %297 = sbr.rel (%p295) target = $region36
        $region35: #{tpu_custom_call.1} parent=11 // pred_region
          _
        $region36: #{tpu_custom_call.1} parent=11 // pred_fallthru
          _
        // Predicated region
        $region37: #{tpu_custom_call.1} parent=11 // pred_check
          %p298 = pneg %p218
        $region38: #{tpu_custom_call.1} parent=11 // pred_check_branch
          %300 = sbr.rel (%p298) target = $region40
        $region39: #{tpu_custom_call.1} parent=11 // pred_region
          _
        $region40: #{tpu_custom_call.1} parent=11 // pred_fallthru
          _
        // Predicated region
        $region41: #{tpu_custom_call.1} parent=11 // pred_check
          %p301 = pneg %p239
        $region42: #{tpu_custom_call.1} parent=11 // pred_check_branch
          %303 = sbr.rel (%p301) target = $region44
        $region43: #{tpu_custom_call.1} parent=11 // pred_region
          _
        $region44: #{tpu_custom_call.1} parent=11 // pred_fallthru
          _
      $region12: #{tpu_custom_call.1} parent=5 // pred_fallthru
        _
      %p304 = scmp.lt.s32.totalorder %s19, 2
      // Predicated region
      $region45: #{tpu_custom_call.1} parent=5 // pred_check
        %p305 = pneg %p304
      $region46: #{tpu_custom_call.1} parent=5 // pred_check_branch
        %307 = sbr.rel (%p305) target = $region48
      $region47: #{tpu_custom_call.1} parent=5 // pred_region
        // Predicated region
        $region49: #{tpu_custom_call.1} parent=47 // pred_check
          %p308 = pneg %p39
        $region50: #{tpu_custom_call.1} parent=47 // pred_check_branch
          %310 = sbr.rel (%p308) target = $region52
        $region51: #{tpu_custom_call.1} parent=47 // pred_region
          %s311 = smul.u32 2, %s19
          %p312 = scmp.lt.s32.totalorder %s311, 3
          %s313 = scalar_select %p312, %s311, 3
          %s314 = scalar_lea.vmem %s0, %s313
          %s315 = smul.u32 2, %s19
        $region52: #{tpu_custom_call.1} parent=47 // pred_fallthru
          _
        // Predicated region
        $region53: #{tpu_custom_call.1} parent=47 // pred_check
          %p316 = pneg %p65
        $region54: #{tpu_custom_call.1} parent=47 // pred_check_branch
          %318 = sbr.rel (%p316) target = $region56
        $region55: #{tpu_custom_call.1} parent=47 // pred_region
          %s319 = smul.u32 2, %s19
          %p320 = scmp.lt.s32.totalorder %s319, 3
          %s321 = scalar_select %p320, %s319, 3
          %s322 = scalar_lea.vmem %s1, %s321
          %s323 = smul.u32 2, %s19
        $region56: #{tpu_custom_call.1} parent=47 // pred_fallthru
          _
      $region48: #{tpu_custom_call.1} parent=5 // pred_fallthru
        _
      %p324 = scmp.le.s32.totalorder 1, %s19
      %p325 = scmp.lt.s32.totalorder %s19, 3
      %p326 = pnand %p324, %p325
      %p327 = pneg %p326
      // Predicated region
      $region57: #{tpu_custom_call.1} parent=5 // pred_check
        _
      $region58: #{tpu_custom_call.1} parent=5 // pred_check_branch
        %329 = sbr.rel (%p326) target = $region60
      $region59: #{tpu_custom_call.1} parent=5 // pred_region
        %s330 = ssub.s32 %s19, 1
        %s331 = smul.u32 2, %s24
        %p332 = scmp.lt.s32.totalorder %s331, 3
        %s333 = scalar_select %p332, %s331, 3
        %s334 = scalar_lea.vmem %s0, %s333
        %p335 = pneg %p45
        %p336 = pneg %p42
        %s337 = smul.u32 2, %s24
        %p338 = scmp.lt.s32.totalorder %s337, 3
        %s339 = scalar_select %p338, %s337, 3
        %s340 = scalar_lea.vmem %s1, %s339
        %p341 = pneg %p71
        %p342 = pneg %p68
        %p343 = pneg %p92
        %p344 = pneg %p89
        %p345 = pneg %p113
        %p346 = pneg %p110
        %p347 = pneg %p134
        %p348 = pneg %p131
        %p349 = pneg %p155
        %p350 = pneg %p152
        %p351 = pneg %p176
        %p352 = pneg %p173
        %p353 = pneg %p197
        %p354 = pneg %p194
        %p355 = pneg %p218
        %p356 = pneg %p215
        %p357 = pneg %p239
        %p358 = pneg %p236
        %p359 = pneg %p265
        %p360 = pneg %p262
        %s361 = sand.u32 %s252, 1
        %s362 = scalar_lea.sflag [#allocation3], %s361
        %s363 = sand.u32 %s252, 1
        %s364 = smul.addr %s363, 2
        %s365 = scalar_lea.vmem [#allocation2], %s364
        %s366 = smul.u32 2, %s24
        %p367 = scmp.lt.s32.totalorder %s366, 3
        %s368 = scalar_select %p367, %s366, 3
        %s369 = scalar_lea.vmem %s0, %s368
        %s370 = smul.u32 2, %s24
        %s371 = smul.u32 2, %s24
        %p372 = scmp.lt.s32.totalorder %s371, 3
        %s373 = scalar_select %p372, %s371, 3
        %s374 = scalar_lea.vmem %s1, %s373
        %s375 = smul.u32 2, %s24
        %s376 = smul.u32 2, %s24
        %v377 = vld [vmem:[%s369] sm:$0x3]
        %v378 = vld [vmem:[%s374] sm:$0x3]
        %v379 = vld [vmem:[%s2] sm:$0xff]
        %v380 = vld [vmem:[%s2 + $0x8] sm:$0xff]
        %v381 = vld [vmem:[%s2 + $0x10] sm:$0xff]
        %v382 = vld [vmem:[%s2 + $0x18] sm:$0xff]
        %v383 = vld [vmem:[%s2 + $0x20] sm:$0xff]
        %v384 = vld [vmem:[%s2 + $0x28] sm:$0xff]
        %v385 = vld [vmem:[%s2 + $0x30] sm:$0xff]
        %v386 = vld [vmem:[%s2 + $0x38] sm:$0xff]
        %v387 = vld [vmem:[%s3] sm:$0xff]
        %v388 = vld [vmem:[%s3 + $0x8] sm:$0xff]
        %v389 = vld [vmem:[%s3 + $0x10] sm:$0xff]
        %v390 = vld [vmem:[%s3 + $0x18] sm:$0xff]
        %v391 = vld [vmem:[%s4] sm:$0xff]
        %v392 = vld [vmem:[%s4 + $0x8] sm:$0xff]
        %v393 = vld [vmem:[%s4 + $0x10] sm:$0xff]
        %v394 = vld [vmem:[%s4 + $0x18] sm:$0xff]
        %v395 = vlaneseq
        %v396 = vshrl.u32 %v395, 7
        %v397 = vadd.s32 %v396, 8
        %v398 = vadd.s32 %v396, 16
        %v399 = vadd.s32 %v396, 24
        %v400 = vadd.s32 %v396, 32
        %v401 = vadd.s32 %v396, 40
        %v402 = vadd.s32 %v396, 48
        %v403 = vadd.s32 %v396, 56
        %v404 = vperm.slane %v377, 0
        %v405 = vperm.slane %v377, 1
        %vm406 = vcmp.ge.s32.totalorder %v396, %v404
        %vm407 = vcmp.ge.s32.totalorder %v396, %v405
        %vm408 = vcmp.ge.s32.totalorder %v397, %v404
        %vm409 = vcmp.ge.s32.totalorder %v397, %v405
        %vm410 = vcmp.ge.s32.totalorder %v398, %v404
        %vm411 = vcmp.ge.s32.totalorder %v398, %v405
        %vm412 = vcmp.ge.s32.totalorder %v399, %v404
        %vm413 = vcmp.ge.s32.totalorder %v399, %v405
        %vm414 = vcmp.ge.s32.totalorder %v400, %v404
        %vm415 = vcmp.ge.s32.totalorder %v400, %v405
        %vm416 = vcmp.ge.s32.totalorder %v401, %v404
        %vm417 = vcmp.ge.s32.totalorder %v401, %v405
        %vm418 = vcmp.ge.s32.totalorder %v402, %v404
        %vm419 = vcmp.ge.s32.totalorder %v402, %v405
        %vm420 = vcmp.ge.s32.totalorder %v403, %v404
        %vm421 = vcmp.ge.s32.totalorder %v403, %v405
        %v422 = vperm.slane %v378, 0
        %v423 = vperm.slane %v378, 1
        %vm424 = vcmp.le.s32.totalorder %v396, %v422
        %vm425 = vcmp.le.s32.totalorder %v396, %v423
        %vm426 = vcmp.le.s32.totalorder %v397, %v422
        %vm427 = vcmp.le.s32.totalorder %v397, %v423
        %vm428 = vcmp.le.s32.totalorder %v398, %v422
        %vm429 = vcmp.le.s32.totalorder %v398, %v423
        %vm430 = vcmp.le.s32.totalorder %v399, %v422
        %vm431 = vcmp.le.s32.totalorder %v399, %v423
        %vm432 = vcmp.le.s32.totalorder %v400, %v422
        %vm433 = vcmp.le.s32.totalorder %v400, %v423
        %vm434 = vcmp.le.s32.totalorder %v401, %v422
        %vm435 = vcmp.le.s32.totalorder %v401, %v423
        %vm436 = vcmp.le.s32.totalorder %v402, %v422
        %vm437 = vcmp.le.s32.totalorder %v402, %v423
        %vm438 = vcmp.le.s32.totalorder %v403, %v422
        %vm439 = vcmp.le.s32.totalorder %v403, %v423
        %vm440 = vmand %vm406, %vm424
        %vm441 = vmand %vm407, %vm425
        %vm442 = vmand %vm408, %vm426
        %vm443 = vmand %vm409, %vm427
        %vm444 = vmand %vm410, %vm428
        %vm445 = vmand %vm411, %vm429
        %vm446 = vmand %vm412, %vm430
        %vm447 = vmand %vm413, %vm431
        %vm448 = vmand %vm414, %vm432
        %vm449 = vmand %vm415, %vm433
        %vm450 = vmand %vm416, %vm434
        %vm451 = vmand %vm417, %vm435
        %vm452 = vmand %vm418, %vm436
        %vm453 = vmand %vm419, %vm437
        %vm454 = vmand %vm420, %vm438
        %vm455 = vmand %vm421, %vm439
        %vm456 = vcmp.eq.s32.totalorder %v396, %v404
        %vm457 = vcmp.eq.s32.totalorder %v396, %v405
        %vm458 = vcmp.eq.s32.totalorder %v397, %v404
        %vm459 = vcmp.eq.s32.totalorder %v397, %v405
        %vm460 = vcmp.eq.s32.totalorder %v398, %v404
        %vm461 = vcmp.eq.s32.totalorder %v398, %v405
        %vm462 = vcmp.eq.s32.totalorder %v399, %v404
        %vm463 = vcmp.eq.s32.totalorder %v399, %v405
        %vm464 = vcmp.eq.s32.totalorder %v400, %v404
        %vm465 = vcmp.eq.s32.totalorder %v400, %v405
        %vm466 = vcmp.eq.s32.totalorder %v401, %v404
        %vm467 = vcmp.eq.s32.totalorder %v401, %v405
        %vm468 = vcmp.eq.s32.totalorder %v402, %v404
        %vm469 = vcmp.eq.s32.totalorder %v402, %v405
        %vm470 = vcmp.eq.s32.totalorder %v403, %v404
        %vm471 = vcmp.eq.s32.totalorder %v403, %v405
        %v472 = vsel %vm456, 1, 0
        %v473 = vsel %vm457, 1, 0
        %v474 = vsel %vm458, 1, 0
        %v475 = vsel %vm459, 1, 0
        %v476 = vsel %vm460, 1, 0
        %v477 = vsel %vm461, 1, 0
        %v478 = vsel %vm462, 1, 0
        %v479 = vsel %vm463, 1, 0
        %v480 = vsel %vm464, 1, 0
        %v481 = vsel %vm465, 1, 0
        %v482 = vsel %vm466, 1, 0
        %v483 = vsel %vm467, 1, 0
        %v484 = vsel %vm468, 1, 0
        %v485 = vsel %vm469, 1, 0
        %v486 = vsel %vm470, 1, 0
        %v487 = vsel %vm471, 1, 0
        %v488 = vcvt.s32.f32 %v472
        %v489 = vcvt.s32.f32 %v473
        %v490 = vcvt.s32.f32 %v474
        %v491 = vcvt.s32.f32 %v475
        %v492 = vcvt.s32.f32 %v476
        %v493 = vcvt.s32.f32 %v477
        %v494 = vcvt.s32.f32 %v478
        %v495 = vcvt.s32.f32 %v479
        %v496 = vcvt.s32.f32 %v480
        %v497 = vcvt.s32.f32 %v481
        %v498 = vcvt.s32.f32 %v482
        %v499 = vcvt.s32.f32 %v483
        %v500 = vcvt.s32.f32 %v484
        %v501 = vcvt.s32.f32 %v485
        %v502 = vcvt.s32.f32 %v486
        %v503 = vcvt.s32.f32 %v487
        %vm504 = vcmp.eq.s32.totalorder %v396, %v422
        %vm505 = vcmp.eq.s32.totalorder %v396, %v423
        %vm506 = vcmp.eq.s32.totalorder %v397, %v422
        %vm507 = vcmp.eq.s32.totalorder %v397, %v423
        %vm508 = vcmp.eq.s32.totalorder %v398, %v422
        %vm509 = vcmp.eq.s32.totalorder %v398, %v423
        %vm510 = vcmp.eq.s32.totalorder %v399, %v422
        %vm511 = vcmp.eq.s32.totalorder %v399, %v423
        %vm512 = vcmp.eq.s32.totalorder %v400, %v422
        %vm513 = vcmp.eq.s32.totalorder %v400, %v423
        %vm514 = vcmp.eq.s32.totalorder %v401, %v422
        %vm515 = vcmp.eq.s32.totalorder %v401, %v423
        %vm516 = vcmp.eq.s32.totalorder %v402, %v422
        %vm517 = vcmp.eq.s32.totalorder %v402, %v423
        %vm518 = vcmp.eq.s32.totalorder %v403, %v422
        %vm519 = vcmp.eq.s32.totalorder %v403, %v423
        %v520 = vsel %vm504, 1, 0
        %v521 = vsel %vm505, 1, 0
        %v522 = vsel %vm506, 1, 0
        %v523 = vsel %vm507, 1, 0
        %v524 = vsel %vm508, 1, 0
        %v525 = vsel %vm509, 1, 0
        %v526 = vsel %vm510, 1, 0
        %v527 = vsel %vm511, 1, 0
        %v528 = vsel %vm512, 1, 0
        %v529 = vsel %vm513, 1, 0
        %v530 = vsel %vm514, 1, 0
        %v531 = vsel %vm515, 1, 0
        %v532 = vsel %vm516, 1, 0
        %v533 = vsel %vm517, 1, 0
        %v534 = vsel %vm518, 1, 0
        %v535 = vsel %vm519, 1, 0
        %v536 = vcvt.s32.f32 %v520
        %v537 = vcvt.s32.f32 %v521
        %v538 = vcvt.s32.f32 %v522
        %v539 = vcvt.s32.f32 %v523
        %v540 = vcvt.s32.f32 %v524
        %v541 = vcvt.s32.f32 %v525
        %v542 = vcvt.s32.f32 %v526
        %v543 = vcvt.s32.f32 %v527
        %v544 = vcvt.s32.f32 %v528
        %v545 = vcvt.s32.f32 %v529
        %v546 = vcvt.s32.f32 %v530
        %v547 = vcvt.s32.f32 %v531
        %v548 = vcvt.s32.f32 %v532
        %v549 = vcvt.s32.f32 %v533
        %v550 = vcvt.s32.f32 %v534
        %v551 = vcvt.s32.f32 %v535
        %553 = vset.pattern.permute.xlu0 0
        %554 = vperm.xlu0 %553, %v379
        %v555 = vpop.permute.xlu0 %554
        %558 = vset.pattern.permute.xlu0 0
        %559 = vperm.xlu0 %558, %v380
        %v560 = vpop.permute.xlu0 %559
        %563 = vset.pattern.permute.xlu0 0
        %564 = vperm.xlu0 %563, %v381
        %v565 = vpop.permute.xlu0 %564
        %568 = vset.pattern.permute.xlu0 0
        %569 = vperm.xlu0 %568, %v382
        %v570 = vpop.permute.xlu0 %569
        %573 = vset.pattern.permute.xlu0 0
        %574 = vperm.xlu0 %573, %v383
        %v575 = vpop.permute.xlu0 %574
        %578 = vset.pattern.permute.xlu0 0
        %579 = vperm.xlu0 %578, %v384
        %v580 = vpop.permute.xlu0 %579
        %583 = vset.pattern.permute.xlu0 0
        %584 = vperm.xlu0 %583, %v385
        %v585 = vpop.permute.xlu0 %584
        %588 = vset.pattern.permute.xlu0 0
        %589 = vperm.xlu0 %588, %v386
        %v590 = vpop.permute.xlu0 %589
        %v592 = vsel %vm440, %v555, -1e+30
        %v593 = vsel %vm441, %v555, -1e+30
        %v594 = vsel %vm442, %v560, -1e+30
        %v595 = vsel %vm443, %v560, -1e+30
        %v596 = vsel %vm444, %v565, -1e+30
        %v597 = vsel %vm445, %v565, -1e+30
        %v598 = vsel %vm446, %v570, -1e+30
        %v599 = vsel %vm447, %v570, -1e+30
        %v600 = vsel %vm448, %v575, -1e+30
        %v601 = vsel %vm449, %v575, -1e+30
        %v602 = vsel %vm450, %v580, -1e+30
        %v603 = vsel %vm451, %v580, -1e+30
        %v604 = vsel %vm452, %v585, -1e+30
        %v605 = vsel %vm453, %v585, -1e+30
        %v606 = vsel %vm454, %v590, -1e+30
        %v607 = vsel %vm455, %v590, -1e+30
        %v608 = vmax.f32 %v592, %v596
        %v609 = vmax.f32 %v594, %v598
        %v610 = vmax.f32 %v608, %v600
        %v611 = vmax.f32 %v609, %v602
        %v612 = vmax.f32 %v610, %v604
        %v613 = vmax.f32 %v611, %v606
        %v614 = vmax.f32 %v612, %v613
        %v615 = vrot.slane %v614, 4
        %v616 = vmax.f32 %v614, %v615
        %v617 = vrot.slane %v616, 2
        %v618 = vmax.f32 %v616, %v617
        %v619 = vrot.slane %v618, 1
        %v620 = vmax.f32 %v618, %v619
        %v621 = vmax.f32 %v593, %v597
        %v622 = vmax.f32 %v595, %v599
        %v623 = vmax.f32 %v621, %v601
        %v624 = vmax.f32 %v622, %v603
        %v625 = vmax.f32 %v623, %v605
        %v626 = vmax.f32 %v624, %v607
        %v627 = vmax.f32 %v625, %v626
        %v628 = vrot.slane %v627, 4
        %v629 = vmax.f32 %v627, %v628
        %v630 = vrot.slane %v629, 2
        %v631 = vmax.f32 %v629, %v630
        %v632 = vrot.slane %v631, 1
        %v633 = vmax.f32 %v631, %v632
        %v634 = vsub.f32 %v592, %v620
        %v635 = vsub.f32 %v593, %v633
        %v636 = vsub.f32 %v594, %v620
        %v637 = vsub.f32 %v595, %v633
        %v638 = vsub.f32 %v596, %v620
        %v639 = vsub.f32 %v597, %v633
        %v640 = vsub.f32 %v598, %v620
        %v641 = vsub.f32 %v599, %v633
        %v642 = vsub.f32 %v600, %v620
        %v643 = vsub.f32 %v601, %v633
        %v644 = vsub.f32 %v602, %v620
        %v645 = vsub.f32 %v603, %v633
        %v646 = vsub.f32 %v604, %v620
        %v647 = vsub.f32 %v605, %v633
        %v648 = vsub.f32 %v606, %v620
        %v649 = vsub.f32 %v607, %v633
        %v650 = vmul.f32 %v634, 1.442695
        %v651 = vpow.pop %v650
        %v652 = vmul.f32 %v635, 1.442695
        %v653 = vpow.pop %v652
        %v654 = vmul.f32 %v636, 1.442695
        %v655 = vpow.pop %v654
        %v656 = vmul.f32 %v637, 1.442695
        %v657 = vpow.pop %v656
        %v658 = vmul.f32 %v638, 1.442695
        %v659 = vpow.pop %v658
        %v660 = vmul.f32 %v639, 1.442695
        %v661 = vpow.pop %v660
        %v662 = vmul.f32 %v640, 1.442695
        %v663 = vpow.pop %v662
        %v664 = vmul.f32 %v641, 1.442695
        %v665 = vpow.pop %v664
        %v666 = vmul.f32 %v642, 1.442695
        %v667 = vpow.pop %v666
        %v668 = vmul.f32 %v643, 1.442695
        %v669 = vpow.pop %v668
        %v670 = vmul.f32 %v644, 1.442695
        %v671 = vpow.pop %v670
        %v672 = vmul.f32 %v645, 1.442695
        %v673 = vpow.pop %v672
        %v674 = vmul.f32 %v646, 1.442695
        %v675 = vpow.pop %v674
        %v676 = vmul.f32 %v647, 1.442695
        %v677 = vpow.pop %v676
        %v678 = vmul.f32 %v648, 1.442695
        %v679 = vpow.pop %v678
        %v680 = vmul.f32 %v649, 1.442695
        %v681 = vpow.pop %v680
        %v682 = vadd.f32 %v651, %v655
        %v683 = vadd.f32 %v682, %v659
        %v684 = vadd.f32 %v683, %v663
        %v685 = vadd.f32 %v684, %v667
        %v686 = vadd.f32 %v685, %v671
        %v687 = vadd.f32 %v686, %v675
        %v688 = vadd.f32 %v687, %v679
        %v689 = vrot.slane %v688, 4
        %v690 = vadd.f32 %v688, %v689
        %v691 = vrot.slane %v690, 2
        %v692 = vadd.f32 %v690, %v691
        %v693 = vrot.slane %v692, 1
        %v694 = vadd.f32 %v692, %v693
        %v695 = vadd.f32 %v653, %v657
        %v696 = vadd.f32 %v695, %v661
        %v697 = vadd.f32 %v696, %v665
        %v698 = vadd.f32 %v697, %v669
        %v699 = vadd.f32 %v698, %v673
        %v700 = vadd.f32 %v699, %v677
        %v701 = vadd.f32 %v700, %v681
        %v702 = vrot.slane %v701, 4
        %v703 = vadd.f32 %v701, %v702
        %v704 = vrot.slane %v703, 2
        %v705 = vadd.f32 %v703, %v704
        %v706 = vrot.slane %v705, 1
        %v707 = vadd.f32 %v705, %v706
        %v708 = vrcp.pop %v694
        %v709 = vrcp.pop %v707
        %vm710 = vcmask 523264
        %v712 = vsel %vm710, %v387, 0
        %v715 = vsel %vm710, %v388, 0
        %v718 = vsel %vm710, %v389, 0
        %v721 = vsel %vm710, %v390, 0
        %723 = vmatpush.msra.mxu0 0.0
        %724 = vmatpush.msra.mxu0 0.0
        %725 = vmatpush.msra.mxu0 0.0
        %726 = vmatpush.msra.mxu0 0.0
        %727 = vmatpush.msra.mxu0 0.0
        %728 = vmatpush.msra.mxu0 0.0
        %729 = vmatpush.msra.mxu0 0.0
        %730 = vmatpush.msra.mxu0 0.0
        %731 = vmatpush.msra.mxu0 %v679
        %732 = vmatpush.msra.mxu0 %v675
        %733 = vmatpush.msra.mxu0 %v671
        %734 = vmatpush.msra.mxu0 %v667
        %735 = vmatpush.msra.mxu0 %v663
        %736 = vmatpush.msra.mxu0 %v659
        %737 = vmatpush.msra.mxu0 %v655
        %738 = vmatpush.msra.mxu0 %v651
        %739 = vmatmul.f32.gmra.mxu0 %v712
        %v740 = vpop.f32.mrf.mxu0
        %v741 = vadd.f32 0.0, %v740
        %742 = vmatmul.f32.gmra.mxu0 %v715
        %v743 = vpop.f32.mrf.mxu0
        %v744 = vadd.f32 0.0, %v743
        %745 = vmatmul.f32.gmra.mxu0 %v718
        %v746 = vpop.f32.mrf.mxu0
        %v747 = vadd.f32 0.0, %v746
        %748 = vmatmul.f32.gmra.mxu0 %v721
        %v749 = vpop.f32.mrf.mxu0
        %v750 = vadd.f32 0.0, %v749
        %751 = vdwg.mxu0
        %752 = vmatpush.msra.mxu0 0.0
        %753 = vmatpush.msra.mxu0 0.0
        %754 = vmatpush.msra.mxu0 0.0
        %755 = vmatpush.msra.mxu0 0.0
        %756 = vmatpush.msra.mxu0 0.0
        %757 = vmatpush.msra.mxu0 0.0
        %758 = vmatpush.msra.mxu0 0.0
        %759 = vmatpush.msra.mxu0 0.0
        %760 = vmatpush.msra.mxu0 %v681
        %761 = vmatpush.msra.mxu0 %v677
        %762 = vmatpush.msra.mxu0 %v673
        %763 = vmatpush.msra.mxu0 %v669
        %764 = vmatpush.msra.mxu0 %v665
        %765 = vmatpush.msra.mxu0 %v661
        %766 = vmatpush.msra.mxu0 %v657
        %767 = vmatpush.msra.mxu0 %v653
        %768 = vmatmul.f32.gmra.mxu0 %v712
        %v769 = vpop.f32.mrf.mxu0
        %v770 = vadd.f32 0.0, %v769
        %771 = vmatmul.f32.gmra.mxu0 %v715
        %v772 = vpop.f32.mrf.mxu0
        %v773 = vadd.f32 0.0, %v772
        %774 = vmatmul.f32.gmra.mxu0 %v718
        %v775 = vpop.f32.mrf.mxu0
        %v776 = vadd.f32 0.0, %v775
        %777 = vmatmul.f32.gmra.mxu0 %v721
        %v778 = vpop.f32.mrf.mxu0
        %v779 = vadd.f32 0.0, %v778
        %780 = vdwg.mxu0
        %v781 = vmul.f32 %v741, %v708
        %v782 = vmul.f32 %v770, %v709
        %v783 = vmul.f32 %v744, %v708
        %v784 = vmul.f32 %v773, %v709
        %v785 = vmul.f32 %v747, %v708
        %v786 = vmul.f32 %v776, %v709
        %v787 = vmul.f32 %v750, %v708
        %v788 = vmul.f32 %v779, %v709
        %v790 = vsel %vm710, %v391, 0
        %v793 = vsel %vm710, %v392, 0
        %v796 = vsel %vm710, %v393, 0
        %v799 = vsel %vm710, %v394, 0
        %801 = vmatpush.msra.mxu0 0.0
        %802 = vmatpush.msra.mxu0 0.0
        %803 = vmatpush.msra.mxu0 0.0
        %804 = vmatpush.msra.mxu0 0.0
        %805 = vmatpush.msra.mxu0 0.0
        %806 = vmatpush.msra.mxu0 0.0
        %807 = vmatpush.msra.mxu0 0.0
        %808 = vmatpush.msra.mxu0 0.0
        %809 = vmatpush.msra.mxu0 %v502
        %810 = vmatpush.msra.mxu0 %v500
        %811 = vmatpush.msra.mxu0 %v498
        %812 = vmatpush.msra.mxu0 %v496
        %813 = vmatpush.msra.mxu0 %v494
        %814 = vmatpush.msra.mxu0 %v492
        %815 = vmatpush.msra.mxu0 %v490
        %816 = vmatpush.msra.mxu0 %v488
        %817 = vmatmul.f32.gmra.mxu0 %v790
        %v818 = vpop.f32.mrf.mxu0
        %v819 = vadd.f32 0.0, %v818
        %820 = vmatmul.f32.gmra.mxu0 %v793
        %v821 = vpop.f32.mrf.mxu0
        %v822 = vadd.f32 0.0, %v821
        %823 = vmatmul.f32.gmra.mxu0 %v796
        %v824 = vpop.f32.mrf.mxu0
        %v825 = vadd.f32 0.0, %v824
        %826 = vmatmul.f32.gmra.mxu0 %v799
        %v827 = vpop.f32.mrf.mxu0
        %v828 = vadd.f32 0.0, %v827
        %829 = vdwg.mxu0
        %830 = vmatpush.msra.mxu0 0.0
        %831 = vmatpush.msra.mxu0 0.0
        %832 = vmatpush.msra.mxu0 0.0
        %833 = vmatpush.msra.mxu0 0.0
        %834 = vmatpush.msra.mxu0 0.0
        %835 = vmatpush.msra.mxu0 0.0
        %836 = vmatpush.msra.mxu0 0.0
        %837 = vmatpush.msra.mxu0 0.0
        %838 = vmatpush.msra.mxu0 %v503
        %839 = vmatpush.msra.mxu0 %v501
        %840 = vmatpush.msra.mxu0 %v499
        %841 = vmatpush.msra.mxu0 %v497
        %842 = vmatpush.msra.mxu0 %v495
        %843 = vmatpush.msra.mxu0 %v493
        %844 = vmatpush.msra.mxu0 %v491
        %845 = vmatpush.msra.mxu0 %v489
        %846 = vmatmul.f32.gmra.mxu0 %v790
        %v847 = vpop.f32.mrf.mxu0
        %v848 = vadd.f32 0.0, %v847
        %849 = vmatmul.f32.gmra.mxu0 %v793
        %v850 = vpop.f32.mrf.mxu0
        %v851 = vadd.f32 0.0, %v850
        %852 = vmatmul.f32.gmra.mxu0 %v796
        %v853 = vpop.f32.mrf.mxu0
        %v854 = vadd.f32 0.0, %v853
        %855 = vmatmul.f32.gmra.mxu0 %v799
        %v856 = vpop.f32.mrf.mxu0
        %v857 = vadd.f32 0.0, %v856
        %858 = vdwg.mxu0
        %859 = vmatpush.msra.mxu0 0.0
        %860 = vmatpush.msra.mxu0 0.0
        %861 = vmatpush.msra.mxu0 0.0
        %862 = vmatpush.msra.mxu0 0.0
        %863 = vmatpush.msra.mxu0 0.0
        %864 = vmatpush.msra.mxu0 0.0
        %865 = vmatpush.msra.mxu0 0.0
        %866 = vmatpush.msra.mxu0 0.0
        %867 = vmatpush.msra.mxu0 %v550
        %868 = vmatpush.msra.mxu0 %v548
        %869 = vmatpush.msra.mxu0 %v546
        %870 = vmatpush.msra.mxu0 %v544
        %871 = vmatpush.msra.mxu0 %v542
        %872 = vmatpush.msra.mxu0 %v540
        %873 = vmatpush.msra.mxu0 %v538
        %874 = vmatpush.msra.mxu0 %v536
        %875 = vmatmul.f32.gmra.mxu0 %v790
        %v876 = vpop.f32.mrf.mxu0
        %v877 = vadd.f32 0.0, %v876
        %878 = vmatmul.f32.gmra.mxu0 %v793
        %v879 = vpop.f32.mrf.mxu0
        %v880 = vadd.f32 0.0, %v879
        %881 = vmatmul.f32.gmra.mxu0 %v796
        %v882 = vpop.f32.mrf.mxu0
        %v883 = vadd.f32 0.0, %v882
        %884 = vmatmul.f32.gmra.mxu0 %v799
        %v885 = vpop.f32.mrf.mxu0
        %v886 = vadd.f32 0.0, %v885
        %887 = vdwg.mxu0
        %888 = vmatpush.msra.mxu0 0.0
        %889 = vmatpush.msra.mxu0 0.0
        %890 = vmatpush.msra.mxu0 0.0
        %891 = vmatpush.msra.mxu0 0.0
        %892 = vmatpush.msra.mxu0 0.0
        %893 = vmatpush.msra.mxu0 0.0
        %894 = vmatpush.msra.mxu0 0.0
        %895 = vmatpush.msra.mxu0 0.0
        %896 = vmatpush.msra.mxu0 %v551
        %897 = vmatpush.msra.mxu0 %v549
        %898 = vmatpush.msra.mxu0 %v547
        %899 = vmatpush.msra.mxu0 %v545
        %900 = vmatpush.msra.mxu0 %v543
        %901 = vmatpush.msra.mxu0 %v541
        %902 = vmatpush.msra.mxu0 %v539
        %903 = vmatpush.msra.mxu0 %v537
        %904 = vmatmul.f32.gmra.mxu0 %v790
        %v905 = vpop.f32.mrf.mxu0
        %v906 = vadd.f32 0.0, %v905
        %907 = vmatmul.f32.gmra.mxu0 %v793
        %v908 = vpop.f32.mrf.mxu0
        %v909 = vadd.f32 0.0, %v908
        %910 = vmatmul.f32.gmra.mxu0 %v796
        %v911 = vpop.f32.mrf.mxu0
        %v912 = vadd.f32 0.0, %v911
        %913 = vmatmul.f32.gmra.mxu0 %v799
        %v914 = vpop.f32.mrf.mxu0
        %v915 = vadd.f32 0.0, %v914
        %916 = vdwg.mxu0
        %v917 = vsub.s32 %v378, %v377
        %v918 = vperm.slane %v917, 0
        %v919 = vperm.slane %v917, 1
        %vm920 = vcmp.eq.s32.totalorder %v396, %v918
        %vm921 = vcmp.eq.s32.totalorder %v396, %v919
        %v922 = vsel %vm920, 1, 0
        %v923 = vsel %vm921, 1, 0
        %v924 = vcvt.s32.f32 %v922
        %v925 = vcvt.s32.f32 %v923
        %v926 = vld [vmem:[%s5] sm:$0xff]
        %v927 = vld [vmem:[%s5 + $0x8] sm:$0xff]
        %vm928 = vcmask 64512
        %v930 = vsel %vm928, %v926, 0
        %v933 = vsel %vm928, %v927, 0
        %935 = vmatpush.msra.mxu0 0.0
        %936 = vmatpush.msra.mxu0 0.0
        %937 = vmatpush.msra.mxu0 0.0
        %938 = vmatpush.msra.mxu0 0.0
        %939 = vmatpush.msra.mxu0 0.0
        %940 = vmatpush.msra.mxu0 0.0
        %941 = vmatpush.msra.mxu0 0.0
        %942 = vmatpush.msra.mxu0 0.0
        %943 = vmatpush.msra.mxu0 0.0
        %944 = vmatpush.msra.mxu0 0.0
        %945 = vmatpush.msra.mxu0 0.0
        %946 = vmatpush.msra.mxu0 0.0
        %947 = vmatpush.msra.mxu0 0.0
        %948 = vmatpush.msra.mxu0 0.0
        %949 = vmatpush.msra.mxu0 0.0
        %950 = vmatpush.msra.mxu0 %v924
        %951 = vmatmul.f32.gmra.mxu0 %v930
        %v952 = vpop.f32.mrf.mxu0
        %v953 = vadd.f32 0.0, %v952
        %954 = vmatmul.f32.gmra.mxu0 %v933
        %v955 = vpop.f32.mrf.mxu0
        %v956 = vadd.f32 0.0, %v955
        %957 = vdwg.mxu0
        %958 = vmatpush.msra.mxu0 0.0
        %959 = vmatpush.msra.mxu0 0.0
        %960 = vmatpush.msra.mxu0 0.0
        %961 = vmatpush.msra.mxu0 0.0
        %962 = vmatpush.msra.mxu0 0.0
        %963 = vmatpush.msra.mxu0 0.0
        %964 = vmatpush.msra.mxu0 0.0
        %965 = vmatpush.msra.mxu0 0.0
        %966 = vmatpush.msra.mxu0 0.0
        %967 = vmatpush.msra.mxu0 0.0
        %968 = vmatpush.msra.mxu0 0.0
        %969 = vmatpush.msra.mxu0 0.0
        %970 = vmatpush.msra.mxu0 0.0
        %971 = vmatpush.msra.mxu0 0.0
        %972 = vmatpush.msra.mxu0 0.0
        %973 = vmatpush.msra.mxu0 %v925
        %974 = vmatmul.f32.gmra.mxu0 %v930
        %v975 = vpop.f32.mrf.mxu0
        %v976 = vadd.f32 0.0, %v975
        %977 = vmatmul.f32.gmra.mxu0 %v933
        %v978 = vpop.f32.mrf.mxu0
        %v979 = vadd.f32 0.0, %v978
        %980 = vdwg.mxu0
        %v981 = vld [vmem:[%s6] sm:$0xff]
        %983 = vset.pattern.permute.xlu0 0
        %984 = vperm.xlu0 %983, %v981
        %v985 = vpop.permute.xlu0 %984
        %v987 = vmul.f32 %v924, %v985
        %v988 = vmul.f32 %v925, %v985
        %v989 = vrot.slane %v987, 4
        %v990 = vadd.f32 %v987, %v989
        %v991 = vrot.slane %v990, 2
        %v992 = vadd.f32 %v990, %v991
        %v993 = vrot.slane %v992, 1
        %v994 = vadd.f32 %v992, %v993
        %v995 = vrot.slane %v988, 4
        %v996 = vadd.f32 %v988, %v995
        %v997 = vrot.slane %v996, 2
        %v998 = vadd.f32 %v996, %v997
        %v999 = vrot.slane %v998, 1
        %v1000 = vadd.f32 %v998, %v999
        %v1001 = vld [vmem:[%s7] sm:$0xff]
        %v1002 = vld [vmem:[%s7 + $0x8] sm:$0xff]
        %v1003 = vld [vmem:[%s7 + $0x10] sm:$0xff]
        %v1004 = vld [vmem:[%s7 + $0x18] sm:$0xff]
        %v1005 = vld [vmem:[%s8] sm:$0xff]
        %v1006 = vld [vmem:[%s8 + $0x8] sm:$0xff]
        %v1007 = vld [vmem:[%s8 + $0x10] sm:$0xff]
        %v1008 = vld [vmem:[%s8 + $0x18] sm:$0xff]
        %1010 = vset.pattern.permute.xlu0 0
        %1011 = vperm.xlu0 %1010, %v1005
        %v1012 = vpop.permute.xlu0 %1011
        %1015 = vset.pattern.permute.xlu0 0
        %1016 = vperm.xlu0 %1015, %v1006
        %v1017 = vpop.permute.xlu0 %1016
        %1020 = vset.pattern.permute.xlu0 0
        %1021 = vperm.xlu0 %1020, %v1007
        %v1022 = vpop.permute.xlu0 %1021
        %1025 = vset.pattern.permute.xlu0 0
        %1026 = vperm.xlu0 %1025, %v1008
        %v1027 = vpop.permute.xlu0 %1026
        %1029 = vmatpush.msra.mxu0 0.0
        %1030 = vmatpush.msra.mxu0 0.0
        %1031 = vmatpush.msra.mxu0 %v787
        %1032 = vmatpush.msra.mxu0 %v785
        %1033 = vmatpush.msra.mxu0 %v783
        %1034 = vmatpush.msra.mxu0 %v781
        %1035 = vmatpush.msra.mxu0 %v956
        %1036 = vmatpush.msra.mxu0 %v953
        %1037 = vmatpush.msra.mxu0 %v886
        %1038 = vmatpush.msra.mxu0 %v883
        %1039 = vmatpush.msra.mxu0 %v880
        %1040 = vmatpush.msra.mxu0 %v877
        %1041 = vmatpush.msra.mxu0 %v828
        %1042 = vmatpush.msra.mxu0 %v825
        %1043 = vmatpush.msra.mxu0 %v822
        %1044 = vmatpush.msra.mxu0 %v819
        %1045 = vmatmul.f32.gmra.mxu0 %v1001
        %v1046 = vpop.f32.mrf.mxu0
        %v1047 = vadd.f32 %v1012, %v1046
        %1048 = vmatmul.f32.gmra.mxu0 %v1002
        %v1049 = vpop.f32.mrf.mxu0
        %v1050 = vadd.f32 %v1017, %v1049
        %1051 = vmatmul.f32.gmra.mxu0 %v1003
        %v1052 = vpop.f32.mrf.mxu0
        %v1053 = vadd.f32 %v1022, %v1052
        %1054 = vmatmul.f32.gmra.mxu0 %v1004
        %v1055 = vpop.f32.mrf.mxu0
        %v1056 = vadd.f32 %v1027, %v1055
        %1057 = vdwg.mxu0
        %1058 = vmatpush.msra.mxu0 0.0
        %1059 = vmatpush.msra.mxu0 0.0
        %1060 = vmatpush.msra.mxu0 %v788
        %1061 = vmatpush.msra.mxu0 %v786
        %1062 = vmatpush.msra.mxu0 %v784
        %1063 = vmatpush.msra.mxu0 %v782
        %1064 = vmatpush.msra.mxu0 %v979
        %1065 = vmatpush.msra.mxu0 %v976
        %1066 = vmatpush.msra.mxu0 %v915
        %1067 = vmatpush.msra.mxu0 %v912
        %1068 = vmatpush.msra.mxu0 %v909
        %1069 = vmatpush.msra.mxu0 %v906
        %1070 = vmatpush.msra.mxu0 %v857
        %1071 = vmatpush.msra.mxu0 %v854
        %1072 = vmatpush.msra.mxu0 %v851
        %1073 = vmatpush.msra.mxu0 %v848
        %1074 = vmatmul.f32.gmra.mxu0 %v1001
        %v1075 = vpop.f32.mrf.mxu0
        %v1076 = vadd.f32 %v1012, %v1075
        %1077 = vmatmul.f32.gmra.mxu0 %v1002
        %v1078 = vpop.f32.mrf.mxu0
        %v1079 = vadd.f32 %v1017, %v1078
        %1080 = vmatmul.f32.gmra.mxu0 %v1003
        %v1081 = vpop.f32.mrf.mxu0
        %v1082 = vadd.f32 %v1022, %v1081
        %1083 = vmatmul.f32.gmra.mxu0 %v1004
        %v1084 = vpop.f32.mrf.mxu0
        %v1085 = vadd.f32 %v1027, %v1084
        %1086 = vdwg.mxu0
        %v1087 = vmax.f32 %v1047, 0.0
        %v1088 = vmax.f32 %v1076, 0.0
        %v1089 = vmax.f32 %v1050, 0.0
        %v1090 = vmax.f32 %v1079, 0.0
        %v1091 = vmax.f32 %v1053, 0.0
        %v1092 = vmax.f32 %v1082, 0.0
        %v1093 = vmax.f32 %v1056, 0.0
        %v1094 = vmax.f32 %v1085, 0.0
        %v1095 = vld [vmem:[%s9] sm:$0xff]
        %v1096 = vld [vmem:[%s9 + $0x8] sm:$0xff]
        %v1097 = vld [vmem:[%s9 + $0x10] sm:$0xff]
        %v1098 = vld [vmem:[%s9 + $0x18] sm:$0xff]
        %1100 = vset.pattern.permute.xlu0 0
        %1101 = vperm.xlu0 %1100, %v1095
        %v1102 = vpop.permute.xlu0 %1101
        %1105 = vset.pattern.permute.xlu0 0
        %1106 = vperm.xlu0 %1105, %v1096
        %v1107 = vpop.permute.xlu0 %1106
        %1110 = vset.pattern.permute.xlu0 0
        %1111 = vperm.xlu0 %1110, %v1097
        %v1112 = vpop.permute.xlu0 %1111
        %1115 = vset.pattern.permute.xlu0 0
        %1116 = vperm.xlu0 %1115, %v1098
        %v1117 = vpop.permute.xlu0 %1116
        %v1119 = vmul.f32 %v1087, %v1102
        %v1120 = vmul.f32 %v1088, %v1102
        %v1121 = vmul.f32 %v1089, %v1107
        %v1122 = vmul.f32 %v1090, %v1107
        %v1123 = vmul.f32 %v1091, %v1112
        %v1124 = vmul.f32 %v1092, %v1112
        %v1125 = vmul.f32 %v1093, %v1117
        %v1126 = vmul.f32 %v1094, %v1117
        %v1127 = vadd.f32 %v1119, %v1121
        %v1128 = vadd.f32 %v1127, %v1123
        %v1129 = vadd.f32 %v1128, %v1125
        %v1130 = vrot.slane %v1129, 4
        %v1131 = vadd.f32 %v1129, %v1130
        %v1132 = vrot.slane %v1131, 2
        %v1133 = vadd.f32 %v1131, %v1132
        %v1134 = vrot.slane %v1133, 1
        %v1135 = vadd.f32 %v1133, %v1134
        %v1136 = vadd.f32 %v1120, %v1122
        %v1137 = vadd.f32 %v1136, %v1124
        %v1138 = vadd.f32 %v1137, %v1126
        %v1139 = vrot.slane %v1138, 4
        %v1140 = vadd.f32 %v1138, %v1139
        %v1141 = vrot.slane %v1140, 2
        %v1142 = vadd.f32 %v1140, %v1141
        %v1143 = vrot.slane %v1142, 1
        %v1144 = vadd.f32 %v1142, %v1143
        %v1145 = vadd.f32 %v1135, %v994
        %v1146 = vadd.f32 %v1144, %v1000
        %v1149 = vrot.slane %v1146, 7
        %vm1150 = vcmask 1040384
        %v1151 = vsel %vm1150, %v1145, %v1149
        %v1153 = vlaneseq
        %vm1154 = vcmp.ge.s32.totalorder %v1153, 0
        %vm1155 = vcmp.lt.s32.totalorder %v1153, 256
        %vm1156 = vmand %vm1154, %vm1155
        %1157 = vst.msk [vmem:[%s365] sm:$0x3] %vm1156, %v1151
        %s1158 = sand.u32 %s252, 1
        %s1159 = scalar_lea.sflag [#allocation3], %s1158
        %s1160 = sand.u32 %s252, 1
        %s1161 = smul.addr %s1160, 2
        %s1162 = scalar_lea.vmem [#allocation2], %s1161
        // Predicated region
        $region61: #{tpu_custom_call.1} parent=59 // pred_check
          %p1163 = pneg %p262
        $region62: #{tpu_custom_call.1} parent=59 // pred_check_branch
          %1165 = sbr.rel (%p1163) target = $region64
        $region63: #{tpu_custom_call.1} parent=59 // pred_region
          %s1166 = smul.u32 2, %s24
          %1168 = vsyncadd %s1159, 0
          %s1169 = scalar_lea.hbm %s10, %s1166
          %s1171 = sshll.u32 %s1162, 4
          %s1172 = int_to_ptr.vmem [resolvable:$true] %s1171
          %s1173 = sshll.u32 %s1169, 4
          %s1174 = int_to_ptr.hbm [resolvable:$true] %s1173
          %1176 = dma.vmem_to_hbm [thread:$0]  %s1172, 32, %s1174, %s1159
        $region64: #{tpu_custom_call.1} parent=59 // pred_fallthru
          _
      $region60: #{tpu_custom_call.1} parent=5 // pred_fallthru
        _
      %p1177 = scmp.le.s32.totalorder 2, %s19
      // Predicated region
      $region65: #{tpu_custom_call.1} parent=5 // pred_check
        %p1178 = pneg %p1177
      $region66: #{tpu_custom_call.1} parent=5 // pred_check_branch
        %1180 = sbr.rel (%p1178) target = $region68
      $region67: #{tpu_custom_call.1} parent=5 // pred_region
        %s1181 = ssub.s32 %s19, 2
        // Predicated region
        $region69: #{tpu_custom_call.1} parent=67 // pred_check
          %p1182 = pneg %p268
        $region70: #{tpu_custom_call.1} parent=67 // pred_check_branch
          %1184 = sbr.rel (%p1182) target = $region72
        $region71: #{tpu_custom_call.1} parent=67 // pred_region
          %s1185 = sand.u32 %s253, 1
          %s1186 = scalar_lea.sflag [#allocation3], %s1185
          %s1187 = sand.u32 %s253, 1
          %s1188 = smul.addr %s1187, 2
          %s1189 = scalar_lea.vmem [#allocation2], %s1188
          %1191 = dma.done %s1186, 32
        $region72: #{tpu_custom_call.1} parent=67 // pred_fallthru
          _
      $region68: #{tpu_custom_call.1} parent=5 // pred_fallthru
        _
    $region6: #{tpu_custom_call.1} parent=1 // loop_footer
      %s23 = sadd.s32 1, %s19
    $region7: #{tpu_custom_call.1} parent=1 // loop_footer_branch
      %18 = sbr.rel target = $region3
    $region8: #{tpu_custom_call.1} parent=1 // loop_exit
      _
    %1192 = vsyncpa [#allocation3], 1
    %s1193 = scalar_lea.sflag [#allocation3], 1
    %1194 = vsyncpa %s1193, 1

</llo_original>
